<compile_context>
chip_gen: v7x
topology: tpu7x:2x2x1
jax: 0.10.0
libtpu: 0.0.40
codegen_flags: <defaults>
</compile_context>

<pallas_src>
import jax
import jax.numpy as jnp
from jax.experimental import pallas as pl
from jax.experimental.pallas import tpu as pltpu

# ---- model config (model_config fields) ----
ENCODER_DIM = 32      # encoder_dim
FILTER_SIZE = 32      # duration_predictor_filter_size
KERNEL = 3            # duration_predictor_kernel_size (padding=1 -> same length)
LN_EPS = 1e-5


# ---------------- fused DurationPredictor kernel ----------------

def _layer_norm(h, g, b):
    mean = jnp.mean(h, axis=-1, keepdims=True)
    var = jnp.mean(jnp.square(h - mean), axis=-1, keepdims=True)
    return (h - mean) * jax.lax.rsqrt(var + LN_EPS) * g + b


def _im2col3(x):
    # x: (S, D).  Returns (S, 3*D) = [x[s-1] | x[s] | x[s+1]] with zeros outside
    # the sequence (matches Conv1d(kernel=3, padding=1)).  Shifts are done with
    # pltpu.roll (XLU, non-negative cyclic shifts only) + iota masking — no
    # padded copy, no wrapper-side pad.
    S = x.shape[0]
    r = jax.lax.broadcasted_iota(jnp.int32, x.shape, 0)
    left = jnp.where(r >= 1, pltpu.roll(x, shift=1, axis=0), 0.0)          # x[s-1]
    # cyclic shift by (S-1) == shift by -1; mask kills the wrapped row.
    right = jnp.where(r <= S - 2,
                      pltpu.roll(x, shift=(S - 1) % S, axis=0), 0.0)       # x[s+1]
    return jnp.concatenate([left, x, right], axis=-1)


def duration_predictor_kernel(x_ref, w1_ref, b1_ref, g1_ref, be1_ref,
                              w2_ref, b2_ref, g2_ref, be2_ref,
                              wl_ref, bl_ref, dp_ref):
    # x_ref: (1, S, Din); conv weights in im2col layout (3*Din, F) / (3*F, F);
    # biases / LN affine: (1, F); wl_ref: (1, F); bl_ref: (1, 1);
    # dp_ref: (1, 1, S) lane-major duration output.
    x = x_ref[0]                                                      # (S, Din)

    # conv1 (single im2col matmul) + LayerNorm + ReLU  (Dropout = identity)
    h1 = jnp.dot(_im2col3(x), w1_ref[...],
                 preferred_element_type=jnp.float32) + b1_ref[...]
    h1 = jnp.maximum(_layer_norm(h1, g1_ref[...], be1_ref[...]), 0.0)

    # conv2 + LayerNorm + ReLU
    h2 = jnp.dot(_im2col3(h1), w2_ref[...],
                 preferred_element_type=jnp.float32) + b2_ref[...]
    h2 = jnp.maximum(_layer_norm(h2, g2_ref[...], be2_ref[...]), 0.0)

    # final linear (F -> 1) folded in as a lane reduction + ReLU
    dp = jnp.sum(h2 * wl_ref[...], axis=-1) + bl_ref[0, 0]            # (S,)
    dp_ref[0, 0, :] = jnp.maximum(dp, 0.0)


def duration_predictor(params, x):
    """DurationPredictor.forward fused into one pallas_call. Returns (B, S)."""
    B, S, Din = x.shape
    F = FILTER_SIZE

    def _rep(shape):
        nd = len(shape)
        return pl.BlockSpec(shape, lambda bi, _nd=nd: (0,) * _nd)

    dp3 = pl.pallas_call(
        duration_predictor_kernel,
        out_shape=jax.ShapeDtypeStruct((B, 1, S), jnp.float32),
        grid=(B,),
        in_specs=[
            pl.BlockSpec((1, S, Din), lambda bi: (bi, 0, 0)),
            _rep((KERNEL * Din, F)),                 # conv1_w (im2col layout)
            _rep((1, F)), _rep((1, F)), _rep((1, F)),
            _rep((KERNEL * F, F)),                   # conv2_w (im2col layout)
            _rep((1, F)), _rep((1, F)), _rep((1, F)),
            _rep((1, F)),                            # lin_w row
            _rep((1, 1)),                            # lin_b
        ],
        out_specs=pl.BlockSpec((1, 1, S), lambda bi: (bi, 0, 0)),
        compiler_params=pltpu.CompilerParams(dimension_semantics=("parallel",)),
    )(x, params["conv1_w"], params["conv1_b"], params["ln1_g"], params["ln1_b"],
      params["conv2_w"], params["conv2_b"], params["ln2_g"], params["ln2_b"],
      params["lin_w"], params["lin_b"])
    # PyTorch's `.squeeze()` would also drop the batch dim when B == 1; we keep
    # an explicit (B, S) shape (equivalent for downstream use).
    return dp3[:, 0, :]


# ---------------- LengthRegulator (alignment @ x), tiled over mel axis ----------------

def lr_tile_kernel(start_ref, dur_ref, x_ref, o_ref):
    # start_ref/dur_ref: (1, L) int32 (exclusive cumsum of durations, durations)
    # x_ref: (1, L, D); o_ref: (1, TM, D)  -- one mel tile of the output.
    TM = o_ref.shape[1]
    L = x_ref.shape[1]
    m0 = pl.program_id(1) * TM
    rows = m0 + jax.lax.broadcasted_iota(jnp.int32, (TM, L), 0)
    start = start_ref[...]                                    # (1, L)
    end = start + dur_ref[...]
    # alignment[m, l] = 1 iff start[l] <= m < start[l] + dur[l]
    align = jnp.logical_and(rows >= start, rows < end).astype(jnp.float32)
    # TODO(synk): on v6e/v7x a bf16 alignment (and bf16 x) would halve the VMEM
    # footprint and use the bf16 MXU path; kept f32 to preserve exact semantics.
    o_ref[0] = jnp.dot(align, x_ref[0], preferred_element_type=jnp.float32)


def length_regulate(x, durations, mel_max_length=None):
    """LengthRegulator.LR: alignment construction + alignment @ x, tiled over mel."""
    durations = durations.astype(jnp.int32)
    if mel_max_length is not None:
        # Teacher-forcing path: static output length, no device->host sync.
        # NOTE: rows past mel_max_length are truncated; callers are expected to
        # pass mel_max_length >= max(sum(durations)) (as in the PyTorch usage).
        M = int(mel_max_length)
    else:
        # Inference path: mirrors the PyTorch `.item()` host sync (dynamic length).
        M = int(jax.device_get(jnp.max(jnp.sum(durations, axis=-1))))
    start = jnp.cumsum(durations, axis=-1) - durations
    B, L, D = x.shape

    TM = M if M <= 256 else 256          # v7x-safe: alignment tile = TM*L*4 bytes
    grid = (B, pl.cdiv(M, TM))

    # Explicit scoped-VMEM budget sized from the actual tiles (with headroom).
    tile_bytes = 4 * (2 * TM * D + 2 * L * D + 4 * L + 6 * TM * L)
    vmem_limit = min(max(tile_bytes + (8 << 20), 16 << 20), 64 << 20)

    # TODO(synk): a gather-based LR (one input row copy per output row, start/dur
    # prefetched via PrefetchScalarGridSpec) would avoid the M*L*D matmul entirely.
    return pl.pallas_call(
        lr_tile_kernel,
        out_shape=jax.ShapeDtypeStruct((B, M, D), jnp.float32),
        grid=grid,
        in_specs=[
            pl.BlockSpec((1, L), lambda bi, mi: (bi, 0)),
            pl.BlockSpec((1, L), lambda bi, mi: (bi, 0)),
            pl.BlockSpec((1, L, D), lambda bi, mi: (bi, 0, 0)),
        ],
        out_specs=pl.BlockSpec((1, TM, D), lambda bi, mi: (bi, mi, 0)),
        compiler_params=pltpu.CompilerParams(
            dimension_semantics=("parallel", "parallel"),
            vmem_limit_bytes=vmem_limit,
        ),
    )(start, durations, x)


def length_regulator_forward(params, x, alpha=1.0, target=None, mel_max_length=None):
    """LengthRegulator.forward."""
    dp_out = duration_predictor(params, x)                    # (B, S)
    if target is not None:
        output = length_regulate(x, target, mel_max_length)
        return output, dp_out
    # inference branch: matches `(out * alpha).round().long()` from the reference
    t = jnp.round(dp_out * alpha).astype(jnp.int32)
    output = length_regulate(x, t)                            # host-synced length
    mel_pos = jnp.arange(1, output.shape[1] + 1, dtype=jnp.int32)[None, :]
    return output, mel_pos


# ---------------- deterministic parameter init ----------------

def init_params(key):
    k = jax.random.split(key, 3)
    p = {}
    # conv weights stored directly in im2col layout: row index = k*Din + c_in.
    p["conv1_w"] = 0.1 * jax.random.normal(k[0], (KERNEL * ENCODER_DIM, FILTER_SIZE), jnp.float32)
    p["conv1_b"] = jnp.zeros((1, FILTER_SIZE), jnp.float32)
    p["ln1_g"] = jnp.ones((1, FILTER_SIZE), jnp.float32)
    p["ln1_b"] = jnp.zeros((1, FILTER_SIZE), jnp.float32)
    p["conv2_w"] = 0.1 * jax.random.normal(k[1], (KERNEL * FILTER_SIZE, FILTER_SIZE), jnp.float32)
    p["conv2_b"] = jnp.zeros((1, FILTER_SIZE), jnp.float32)
    p["ln2_g"] = jnp.ones((1, FILTER_SIZE), jnp.float32)
    p["ln2_b"] = jnp.zeros((1, FILTER_SIZE), jnp.float32)
    p["lin_w"] = 0.1 * jax.random.normal(k[2], (1, FILTER_SIZE), jnp.float32)
    p["lin_b"] = jnp.zeros((1, 1), jnp.float32)
    return p


# ---------------- pure-JAX reference (for correctness check) ----------------

def _reference_forward(params, x, durations, mel_max_length):
    B, S, Din = x.shape
    hp = jax.lax.Precision.HIGHEST

    def ln(h, g, b):
        mu = jnp.mean(h, axis=-1, keepdims=True)
        var = jnp.mean(jnp.square(h - mu), axis=-1, keepdims=True)
        return (h - mu) * jax.lax.rsqrt(var + LN_EPS) * g + b

    xp = jnp.pad(x, ((0, 0), (1, 1), (0, 0)))
    w1 = params["conv1_w"].reshape(KERNEL, Din, FILTER_SIZE)
    h1 = sum(jnp.einsum("bsd,df->bsf", xp[:, k:k + S], w1[k], precision=hp)
             for k in range(KERNEL)) + params["conv1_b"]
    h1 = jnp.maximum(ln(h1, params["ln1_g"], params["ln1_b"]), 0.0)

    h1p = jnp.pad(h1, ((0, 0), (1, 1), (0, 0)))
    w2 = params["conv2_w"].reshape(KERNEL, FILTER_SIZE, FILTER_SIZE)
    h2 = sum(jnp.einsum("bsf,fg->bsg", h1p[:, k:k + S], w2[k], precision=hp)
             for k in range(KERNEL)) + params["conv2_b"]
    h2 = jnp.maximum(ln(h2, params["ln2_g"], params["ln2_b"]), 0.0)

    dp = jnp.maximum(
        jnp.einsum("bsf,f->bs", h2, params["lin_w"][0], precision=hp)
        + params["lin_b"][0, 0], 0.0)

    dur = durations.astype(jnp.int32)
    start = jnp.cumsum(dur, axis=-1) - dur
    rows = jnp.arange(mel_max_length, dtype=jnp.int32)[None, :, None]
    align = ((rows >= start[:, None, :]) &
             (rows < (start + dur)[:, None, :])).astype(jnp.float32)
    out = jnp.einsum("bml,bld->bmd", align, x, precision=hp)
    return out, dp


if __name__ == "__main__":
    import numpy as np

    key = jax.random.PRNGKey(0)
    kp, kx, kt = jax.random.split(key, 3)
    params = init_params(kp)

    B, S = 2, 8
    x = jax.random.normal(kx, (B, S, ENCODER_DIM), jnp.float32)
    target = jax.random.randint(kt, (B, S), 1, 5, dtype=jnp.int32)   # durations 1..4
    mel_max_length = 40                                              # >= max(sum durations)

    output, dp_out = length_regulator_forward(
        params, x, target=target, mel_max_length=mel_max_length)
    jax.block_until_ready((output, dp_out))

    assert output.shape == (B, mel_max_length, ENCODER_DIM)
    assert dp_out.shape == (B, S)

    out_ref, dp_ref = _reference_forward(params, x, target, mel_max_length)
    np.testing.assert_allclose(np.asarray(dp_out), np.asarray(dp_ref), rtol=2e-3, atol=2e-3)
    np.testing.assert_allclose(np.asarray(output), np.asarray(out_ref), rtol=2e-3, atol=2e-3)

    print("KERNEL_OK")
</pallas_src>

<mosaic_0001>
module attributes {stable_mosaic.version = 11 : i64} {
  func.func @duration_predictor_kernel(%arg0: i32, %arg1: memref<1x8x32xf32, #tpu.memory_space<vmem>>, %arg2: memref<96x32xf32, #tpu.memory_space<vmem>>, %arg3: memref<1x32xf32, #tpu.memory_space<vmem>>, %arg4: memref<1x32xf32, #tpu.memory_space<vmem>>, %arg5: memref<1x32xf32, #tpu.memory_space<vmem>>, %arg6: memref<96x32xf32, #tpu.memory_space<vmem>>, %arg7: memref<1x32xf32, #tpu.memory_space<vmem>>, %arg8: memref<1x32xf32, #tpu.memory_space<vmem>>, %arg9: memref<1x32xf32, #tpu.memory_space<vmem>>, %arg10: memref<1x32xf32, #tpu.memory_space<vmem>>, %arg11: memref<1x1xf32, #tpu.memory_space<vmem>>, %arg12: memref<1x1x8xf32, #tpu.memory_space<vmem>>) attributes {dimension_semantics = [#tpu.dimension_semantics<parallel>], iteration_bounds = array<i64: 2>, scalar_prefetch = 0 : i64, scratch_operands = 0 : i64, tpu.core_type = #tpu.core_type<tc>, window_params = [{transform_indices = @transform_0, window_bounds = array<i64: 1, 8, 32>}, {pipeline_mode = #tpu.pipeline_mode<synchronous>, transform_indices = @transform_1, window_bounds = array<i64: 96, 32>}, {pipeline_mode = #tpu.pipeline_mode<synchronous>, transform_indices = @transform_2, window_bounds = array<i64: 1, 32>}, {pipeline_mode = #tpu.pipeline_mode<synchronous>, transform_indices = @transform_3, window_bounds = array<i64: 1, 32>}, {pipeline_mode = #tpu.pipeline_mode<synchronous>, transform_indices = @transform_4, window_bounds = array<i64: 1, 32>}, {pipeline_mode = #tpu.pipeline_mode<synchronous>, transform_indices = @transform_5, window_bounds = array<i64: 96, 32>}, {pipeline_mode = #tpu.pipeline_mode<synchronous>, transform_indices = @transform_6, window_bounds = array<i64: 1, 32>}, {pipeline_mode = #tpu.pipeline_mode<synchronous>, transform_indices = @transform_7, window_bounds = array<i64: 1, 32>}, {pipeline_mode = #tpu.pipeline_mode<synchronous>, transform_indices = @transform_8, window_bounds = array<i64: 1, 32>}, {pipeline_mode = #tpu.pipeline_mode<synchronous>, transform_indices = @transform_9, window_bounds = array<i64: 1, 32>}, {pipeline_mode = #tpu.pipeline_mode<synchronous>, transform_indices = @transform_10, window_bounds = array<i64: 1, 1>}, {transform_indices = @transform_11, window_bounds = array<i64: 1, 1, 8>}]} {
    %c0 = arith.constant 0 : index
    %c0_0 = arith.constant 0 : index
    %c0_1 = arith.constant 0 : index
    %0 = vector.load %arg1[%c0, %c0_0, %c0_1] : memref<1x8x32xf32, #tpu.memory_space<vmem>>, vector<1x8x32xf32>
    %1 = vector.shape_cast %0 : vector<1x8x32xf32> to vector<8x32xf32>
    %2 = tpu.iota {dimensions = array<i32: 0>} : vector<8x32xi32>
    %c1_i32 = arith.constant 1 : i32
    %3 = vector.broadcast %c1_i32 : i32 to vector<8x32xi32>
    %4 = arith.cmpi sge, %2, %3 : vector<8x32xi32>
    %c1_i32_2 = arith.constant 1 : i32
    %5 = tpu.dynamic_rotate %1 by %c1_i32_2 dim 0 : vector<8x32xf32>, i32 -> vector<8x32xf32>
    %cst = arith.constant 0.000000e+00 : f32
    %6 = vector.broadcast %cst : f32 to vector<8x32xf32>
    %7 = arith.select %4, %5, %6 : vector<8x32xi1>, vector<8x32xf32>
    %c6_i32 = arith.constant 6 : i32
    %8 = vector.broadcast %c6_i32 : i32 to vector<8x32xi32>
    %9 = arith.cmpi sle, %2, %8 : vector<8x32xi32>
    %c7_i32 = arith.constant 7 : i32
    %10 = tpu.dynamic_rotate %1 by %c7_i32 dim 0 : vector<8x32xf32>, i32 -> vector<8x32xf32>
    %cst_3 = arith.constant 0.000000e+00 : f32
    %11 = vector.broadcast %cst_3 : f32 to vector<8x32xf32>
    %12 = arith.select %9, %10, %11 : vector<8x32xi1>, vector<8x32xf32>
    %13 = tpu.concatenate %7, %1, %12 in 1 : vector<8x32xf32>, vector<8x32xf32>, vector<8x32xf32> -> vector<8x96xf32>
    %c0_4 = arith.constant 0 : index
    %c0_5 = arith.constant 0 : index
    %14 = vector.load %arg2[%c0_4, %c0_5] : memref<96x32xf32, #tpu.memory_space<vmem>>, vector<96x32xf32>
    %cst_6 = arith.constant dense<0.000000e+00> : vector<8x32xf32>
    %15 = tpu.matmul %13, %14, %cst_6 {dimension_numbers = #tpu.dot_dimension_numbers<[1], [0], [0], [1], [0, 0, 1, 1], [], []>} : vector<8x96xf32>, vector<96x32xf32>, vector<8x32xf32> -> vector<8x32xf32>
    %c0_7 = arith.constant 0 : index
    %c0_8 = arith.constant 0 : index
    %16 = vector.load %arg3[%c0_7, %c0_8] : memref<1x32xf32, #tpu.memory_space<vmem>>, vector<1x32xf32>
    %17 = vector.broadcast %16 : vector<1x32xf32> to vector<8x32xf32>
    %18 = arith.addf %15, %17 : vector<8x32xf32>
    %c0_9 = arith.constant 0 : index
    %c0_10 = arith.constant 0 : index
    %19 = vector.load %arg4[%c0_9, %c0_10] : memref<1x32xf32, #tpu.memory_space<vmem>>, vector<1x32xf32>
    %c0_11 = arith.constant 0 : index
    %c0_12 = arith.constant 0 : index
    %20 = vector.load %arg5[%c0_11, %c0_12] : memref<1x32xf32, #tpu.memory_space<vmem>>, vector<1x32xf32>
    %cst_13 = arith.constant dense<0.000000e+00> : vector<8xf32>
    %21 = vector.multi_reduction <add>, %18, %cst_13 [1] : vector<8x32xf32> to vector<8xf32>
    %22 = vector.shape_cast %21 : vector<8xf32> to vector<8x1xf32>
    %cst_14 = arith.constant 3.200000e+01 : f32
    %23 = vector.broadcast %cst_14 : f32 to vector<8x1xf32>
    %24 = arith.divf %22, %23 : vector<8x1xf32>
    %25 = vector.broadcast %24 : vector<8x1xf32> to vector<8x32xf32>
    %26 = arith.subf %18, %25 : vector<8x32xf32>
    %27 = arith.mulf %26, %26 : vector<8x32xf32>
    %cst_15 = arith.constant dense<0.000000e+00> : vector<8xf32>
    %28 = vector.multi_reduction <add>, %27, %cst_15 [1] : vector<8x32xf32> to vector<8xf32>
    %29 = vector.shape_cast %28 : vector<8xf32> to vector<8x1xf32>
    %cst_16 = arith.constant 3.200000e+01 : f32
    %30 = vector.broadcast %cst_16 : f32 to vector<8x1xf32>
    %31 = arith.divf %29, %30 : vector<8x1xf32>
    %32 = vector.broadcast %24 : vector<8x1xf32> to vector<8x32xf32>
    %33 = arith.subf %18, %32 : vector<8x32xf32>
    %cst_17 = arith.constant 9.99999974E-6 : f32
    %34 = vector.broadcast %cst_17 : f32 to vector<8x1xf32>
    %35 = arith.addf %31, %34 : vector<8x1xf32>
    %36 = math.rsqrt %35 : vector<8x1xf32>
    %37 = vector.broadcast %36 : vector<8x1xf32> to vector<8x32xf32>
    %38 = arith.mulf %33, %37 : vector<8x32xf32>
    %39 = vector.broadcast %19 : vector<1x32xf32> to vector<8x32xf32>
    %40 = arith.mulf %38, %39 : vector<8x32xf32>
    %41 = vector.broadcast %20 : vector<1x32xf32> to vector<8x32xf32>
    %42 = arith.addf %40, %41 : vector<8x32xf32>
    %cst_18 = arith.constant 0.000000e+00 : f32
    %43 = vector.broadcast %cst_18 : f32 to vector<8x32xf32>
    %44 = arith.maximumf %42, %43 : vector<8x32xf32>
    %45 = tpu.iota {dimensions = array<i32: 0>} : vector<8x32xi32>
    %c1_i32_19 = arith.constant 1 : i32
    %46 = vector.broadcast %c1_i32_19 : i32 to vector<8x32xi32>
    %47 = arith.cmpi sge, %45, %46 : vector<8x32xi32>
    %c1_i32_20 = arith.constant 1 : i32
    %48 = tpu.dynamic_rotate %44 by %c1_i32_20 dim 0 : vector<8x32xf32>, i32 -> vector<8x32xf32>
    %cst_21 = arith.constant 0.000000e+00 : f32
    %49 = vector.broadcast %cst_21 : f32 to vector<8x32xf32>
    %50 = arith.select %47, %48, %49 : vector<8x32xi1>, vector<8x32xf32>
    %c6_i32_22 = arith.constant 6 : i32
    %51 = vector.broadcast %c6_i32_22 : i32 to vector<8x32xi32>
    %52 = arith.cmpi sle, %45, %51 : vector<8x32xi32>
    %c7_i32_23 = arith.constant 7 : i32
    %53 = tpu.dynamic_rotate %44 by %c7_i32_23 dim 0 : vector<8x32xf32>, i32 -> vector<8x32xf32>
    %cst_24 = arith.constant 0.000000e+00 : f32
    %54 = vector.broadcast %cst_24 : f32 to vector<8x32xf32>
    %55 = arith.select %52, %53, %54 : vector<8x32xi1>, vector<8x32xf32>
    %56 = tpu.concatenate %50, %44, %55 in 1 : vector<8x32xf32>, vector<8x32xf32>, vector<8x32xf32> -> vector<8x96xf32>
    %c0_25 = arith.constant 0 : index
    %c0_26 = arith.constant 0 : index
    %57 = vector.load %arg6[%c0_25, %c0_26] : memref<96x32xf32, #tpu.memory_space<vmem>>, vector<96x32xf32>
    %cst_27 = arith.constant dense<0.000000e+00> : vector<8x32xf32>
    %58 = tpu.matmul %56, %57, %cst_27 {dimension_numbers = #tpu.dot_dimension_numbers<[1], [0], [0], [1], [0, 0, 1, 1], [], []>} : vector<8x96xf32>, vector<96x32xf32>, vector<8x32xf32> -> vector<8x32xf32>
    %c0_28 = arith.constant 0 : index
    %c0_29 = arith.constant 0 : index
    %59 = vector.load %arg7[%c0_28, %c0_29] : memref<1x32xf32, #tpu.memory_space<vmem>>, vector<1x32xf32>
    %60 = vector.broadcast %59 : vector<1x32xf32> to vector<8x32xf32>
    %61 = arith.addf %58, %60 : vector<8x32xf32>
    %c0_30 = arith.constant 0 : index
    %c0_31 = arith.constant 0 : index
    %62 = vector.load %arg8[%c0_30, %c0_31] : memref<1x32xf32, #tpu.memory_space<vmem>>, vector<1x32xf32>
    %c0_32 = arith.constant 0 : index
    %c0_33 = arith.constant 0 : index
    %63 = vector.load %arg9[%c0_32, %c0_33] : memref<1x32xf32, #tpu.memory_space<vmem>>, vector<1x32xf32>
    %cst_34 = arith.constant dense<0.000000e+00> : vector<8xf32>
    %64 = vector.multi_reduction <add>, %61, %cst_34 [1] : vector<8x32xf32> to vector<8xf32>
    %65 = vector.shape_cast %64 : vector<8xf32> to vector<8x1xf32>
    %cst_35 = arith.constant 3.200000e+01 : f32
    %66 = vector.broadcast %cst_35 : f32 to vector<8x1xf32>
    %67 = arith.divf %65, %66 : vector<8x1xf32>
    %68 = vector.broadcast %67 : vector<8x1xf32> to vector<8x32xf32>
    %69 = arith.subf %61, %68 : vector<8x32xf32>
    %70 = arith.mulf %69, %69 : vector<8x32xf32>
    %cst_36 = arith.constant dense<0.000000e+00> : vector<8xf32>
    %71 = vector.multi_reduction <add>, %70, %cst_36 [1] : vector<8x32xf32> to vector<8xf32>
    %72 = vector.shape_cast %71 : vector<8xf32> to vector<8x1xf32>
    %cst_37 = arith.constant 3.200000e+01 : f32
    %73 = vector.broadcast %cst_37 : f32 to vector<8x1xf32>
    %74 = arith.divf %72, %73 : vector<8x1xf32>
    %75 = vector.broadcast %67 : vector<8x1xf32> to vector<8x32xf32>
    %76 = arith.subf %61, %75 : vector<8x32xf32>
    %cst_38 = arith.constant 9.99999974E-6 : f32
    %77 = vector.broadcast %cst_38 : f32 to vector<8x1xf32>
    %78 = arith.addf %74, %77 : vector<8x1xf32>
    %79 = math.rsqrt %78 : vector<8x1xf32>
    %80 = vector.broadcast %79 : vector<8x1xf32> to vector<8x32xf32>
    %81 = arith.mulf %76, %80 : vector<8x32xf32>
    %82 = vector.broadcast %62 : vector<1x32xf32> to vector<8x32xf32>
    %83 = arith.mulf %81, %82 : vector<8x32xf32>
    %84 = vector.broadcast %63 : vector<1x32xf32> to vector<8x32xf32>
    %85 = arith.addf %83, %84 : vector<8x32xf32>
    %cst_39 = arith.constant 0.000000e+00 : f32
    %86 = vector.broadcast %cst_39 : f32 to vector<8x32xf32>
    %87 = arith.maximumf %85, %86 : vector<8x32xf32>
    %c0_40 = arith.constant 0 : index
    %c0_41 = arith.constant 0 : index
    %88 = vector.load %arg10[%c0_40, %c0_41] : memref<1x32xf32, #tpu.memory_space<vmem>>, vector<1x32xf32>
    %89 = vector.broadcast %88 : vector<1x32xf32> to vector<8x32xf32>
    %90 = arith.mulf %87, %89 : vector<8x32xf32>
    %cst_42 = arith.constant dense<0.000000e+00> : vector<8xf32>
    %91 = vector.multi_reduction <add>, %90, %cst_42 [1] : vector<8x32xf32> to vector<8xf32>
    %c0_43 = arith.constant 0 : index
    %c0_44 = arith.constant 0 : index
    %92 = vector.load %arg11[%c0_43, %c0_44] : memref<1x1xf32, #tpu.memory_space<vmem>>, vector<1x1xf32>
    %93 = vector.extract %92[0, 0] : f32 from vector<1x1xf32>
    %94 = vector.broadcast %93 : f32 to vector<8xf32>
    %95 = arith.addf %91, %94 : vector<8xf32>
    %cst_45 = arith.constant 0.000000e+00 : f32
    %96 = vector.broadcast %cst_45 : f32 to vector<8xf32>
    %97 = arith.maximumf %95, %96 : vector<8xf32>
    %c0_46 = arith.constant 0 : index
    %c0_47 = arith.constant 0 : index
    %c0_48 = arith.constant 0 : index
    %98 = vector.load %arg12[%c0_46, %c0_47, %c0_48] : memref<1x1x8xf32, #tpu.memory_space<vmem>>, vector<1x1x8xf32>
    %99 = vector.shape_cast %98 : vector<1x1x8xf32> to vector<8xf32>
    %100 = vector.shape_cast %97 : vector<8xf32> to vector<1x1x8xf32>
    tpu.vector_store %arg12[%c0_46, %c0_47, %c0_48], %100 {strides = array<i32>} : memref<1x1x8xf32, #tpu.memory_space<vmem>>, vector<1x1x8xf32>,
    return
  }
  func.func @transform_0(%arg0: i32) -> (i32, i32, i32) {
    %c0_i32 = arith.constant 0 : i32
    %c0_i32_0 = arith.constant 0 : i32
    %c0_i32_1 = arith.constant 0 : i32
    return %arg0, %c0_i32, %c0_i32_0 : i32, i32, i32
  }
  func.func @transform_1(%arg0: i32) -> (i32, i32) {
    %c0_i32 = arith.constant 0 : i32
    %c0_i32_0 = arith.constant 0 : i32
    %c0_i32_1 = arith.constant 0 : i32
    return %c0_i32, %c0_i32_0 : i32, i32
  }
  func.func @transform_2(%arg0: i32) -> (i32, i32) {
    %c0_i32 = arith.constant 0 : i32
    %c0_i32_0 = arith.constant 0 : i32
    %c0_i32_1 = arith.constant 0 : i32
    return %c0_i32, %c0_i32_0 : i32, i32
  }
  func.func @transform_3(%arg0: i32) -> (i32, i32) {
    %c0_i32 = arith.constant 0 : i32
    %c0_i32_0 = arith.constant 0 : i32
    %c0_i32_1 = arith.constant 0 : i32
    return %c0_i32, %c0_i32_0 : i32, i32
  }
  func.func @transform_4(%arg0: i32) -> (i32, i32) {
    %c0_i32 = arith.constant 0 : i32
    %c0_i32_0 = arith.constant 0 : i32
    %c0_i32_1 = arith.constant 0 : i32
    return %c0_i32, %c0_i32_0 : i32, i32
  }
  func.func @transform_5(%arg0: i32) -> (i32, i32) {
    %c0_i32 = arith.constant 0 : i32
    %c0_i32_0 = arith.constant 0 : i32
    %c0_i32_1 = arith.constant 0 : i32
    return %c0_i32, %c0_i32_0 : i32, i32
  }
  func.func @transform_6(%arg0: i32) -> (i32, i32) {
    %c0_i32 = arith.constant 0 : i32
    %c0_i32_0 = arith.constant 0 : i32
    %c0_i32_1 = arith.constant 0 : i32
    return %c0_i32, %c0_i32_0 : i32, i32
  }
  func.func @transform_7(%arg0: i32) -> (i32, i32) {
    %c0_i32 = arith.constant 0 : i32
    %c0_i32_0 = arith.constant 0 : i32
    %c0_i32_1 = arith.constant 0 : i32
    return %c0_i32, %c0_i32_0 : i32, i32
  }
  func.func @transform_8(%arg0: i32) -> (i32, i32) {
    %c0_i32 = arith.constant 0 : i32
    %c0_i32_0 = arith.constant 0 : i32
    %c0_i32_1 = arith.constant 0 : i32
    return %c0_i32, %c0_i32_0 : i32, i32
  }
  func.func @transform_9(%arg0: i32) -> (i32, i32) {
    %c0_i32 = arith.constant 0 : i32
    %c0_i32_0 = arith.constant 0 : i32
    %c0_i32_1 = arith.constant 0 : i32
    return %c0_i32, %c0_i32_0 : i32, i32
  }
  func.func @transform_10(%arg0: i32) -> (i32, i32) {
    %c0_i32 = arith.constant 0 : i32
    %c0_i32_0 = arith.constant 0 : i32
    %c0_i32_1 = arith.constant 0 : i32
    return %c0_i32, %c0_i32_0 : i32, i32
  }
  func.func @transform_11(%arg0: i32) -> (i32, i32, i32) {
    %c0_i32 = arith.constant 0 : i32
    %c0_i32_0 = arith.constant 0 : i32
    %c0_i32_1 = arith.constant 0 : i32
    return %arg0, %c0_i32, %c0_i32_0 : i32, i32, i32
  }
}

</mosaic_0001>

<llo_original>
// kernel: tpu_custom_call.1
$region0: #{tpu_custom_call.1}
  #allocation0 [shape = 'u32[]', space=smem, size = 0x4, offset = 0x4, fixed_abs, tag = 'smem constant byte address 0x4 - core index']
  #allocation1 [shape = 'u32[144,128]{1,0:T(1,128)}', space=vmem, size = 0x12000, scoped, tag = 'internal scratch']
  #allocation2 [shape = 'f32[1,1]{1,0:T(1,128)S(1)}', space=vmem, size = 0x200, scoped, tag = 'scoped memory for tpu_custom_call.1']
  %s0 = inlined_call_operand.vmem [shape: f32[2,8,32], index: 0, kind: input, shape index: {}]
  %s1 = inlined_call_operand.vmem [shape: f32[96,32], index: 1, kind: input, shape index: {}]
  %s2 = inlined_call_operand.vmem [shape: f32[1,32], index: 2, kind: input, shape index: {}]
  %s3 = inlined_call_operand.vmem [shape: f32[1,32], index: 3, kind: input, shape index: {}]
  %s4 = inlined_call_operand.vmem [shape: f32[1,32], index: 4, kind: input, shape index: {}]
  %s5 = inlined_call_operand.vmem [shape: f32[96,32], index: 5, kind: input, shape index: {}]
  %s6 = inlined_call_operand.vmem [shape: f32[1,32], index: 6, kind: input, shape index: {}]
  %s7 = inlined_call_operand.vmem [shape: f32[1,32], index: 7, kind: input, shape index: {}]
  %s8 = inlined_call_operand.vmem [shape: f32[1,32], index: 8, kind: input, shape index: {}]
  %s9 = inlined_call_operand.vmem [shape: f32[1,32], index: 9, kind: input, shape index: {}]
  %s10 = inlined_call_operand.<no memory space> [shape: f32[1,1], index: 10, kind: input, shape index: {}]
  %s11 = inlined_call_operand.hbm [shape: f32[2,1,8], index: 11, kind: output, shape index: {}]
  %s12 = sld [smem:[#allocation0]]
  $region77: #{tpu_custom_call.1} parent=0
    _
  %s14 = ssub.s32 1, %s12
  %s15 = scalar_select 0, %s14, %s12
  %v16 = vstv %s10
  %17 = vst [vmem:[#allocation2] sm:$0x1] %v16
  $region1: #{tpu_custom_call.1} parent=0
    #allocation3 [shape = 'u8[1024]{0}', space=vmem, size = 0x400, scoped, tag = 'output window, operand 0']
    #allocation4 [shape = 's32[2]{0}', space=sflag, size = 0x8, scoped, tag = 'scoped memory for tpu_custom_call.1']
    %18 = vsyncpa [#allocation4], 0
    %s19 = scalar_lea.sflag [#allocation4], 1
    %20 = vsyncpa %s19, 0
    loop: start=0, step=1, limit=4
    $region2: #{tpu_custom_call.1} parent=1 // loop_pre_header
      _
    $region3: #{tpu_custom_call.1} parent=1 // loop_header
      %s22 = sphi 0, %s26
      %p23 = scmp.ge.s32.totalorder %s22, 4
      %s32 = sphi 0, %s34
      %s35 = sphi 0, %s32
      %s36 = sphi 0, %s35
      %s52 = sphi 0, %s36
      %s56 = sphi 0, %s56
      %s58 = sphi 0, %s56
      %s59 = sphi 0, %s58
      %s73 = sphi 0, %s59
      %s77 = sphi 0, %s77
      %s79 = sphi 0, %s77
      %s80 = sphi 0, %s79
      %s94 = sphi 0, %s80
      %s98 = sphi 0, %s98
      %s100 = sphi 0, %s98
      %s101 = sphi 0, %s100
      %s115 = sphi 0, %s101
      %s119 = sphi 0, %s119
      %s121 = sphi 0, %s119
      %s122 = sphi 0, %s121
      %s136 = sphi 0, %s122
      %s140 = sphi 0, %s140
      %s142 = sphi 0, %s140
      %s143 = sphi 0, %s142
      %s157 = sphi 0, %s143
      %s161 = sphi 0, %s161
      %s163 = sphi 0, %s161
      %s164 = sphi 0, %s163
      %s178 = sphi 0, %s164
      %s182 = sphi 0, %s182
      %s184 = sphi 0, %s182
      %s185 = sphi 0, %s184
      %s199 = sphi 0, %s185
      %s203 = sphi 0, %s203
      %s205 = sphi 0, %s203
      %s206 = sphi 0, %s205
      %s220 = sphi 0, %s206
      %s224 = sphi 0, %s224
      %s226 = sphi 0, %s224
      %s227 = sphi 0, %s226
      %s241 = sphi 0, %s227
      %s245 = sphi 0, %s245
      %s247 = sphi 0, %s245
      %s248 = sphi 0, %s247
      %s262 = sphi 0, %s248
      %s268 = sphi 0, %s270
      %s271 = sphi 0, %s268
      %s272 = sphi 0, %s271
      %s288 = sphi 0, %s272
    $region4: #{tpu_custom_call.1} parent=1 // loop_header_branch
      %25 = sbr.rel (%p23) target = $region8
    $region5: #{tpu_custom_call.1} parent=1 // loop_body
      %s27 = ssub.s32 %s22, 1
      %s28 = ssub.s32 %s22, 2
      %s29 = sadd.s32 %s22, 1
      %s30 = ssub.s32 %s22, %s29
      %p31 = scmp.eq.s32.totalorder %s30, 0
      %s33 = sadd.s32 %s32, 1
      %s34 = scalar_select %p31, %s32, %s33
      %p37 = pneg %p31
      %p38 = scmp.eq.s32.totalorder %s22, 1
      %p39 = por %p37, %p38
      %p40 = scmp.ne.s32.totalorder %s32, %s35
      %p41 = scmp.eq.s32.totalorder %s22, 0
      %p42 = por %p40, %p41
      %p43 = scmp.ne.s32.totalorder %s32, %s35
      %p44 = scmp.eq.s32.totalorder %s27, 1
      %p45 = por %p43, %p44
      %p46 = scmp.ne.s32.totalorder %s35, %s36
      %p47 = scmp.eq.s32.totalorder %s27, 0
      %p48 = por %p46, %p47
      %p49 = scmp.ne.s32.totalorder %s35, %s36
      %p50 = scmp.eq.s32.totalorder %s28, 1
      %p51 = por %p49, %p50
      %p53 = scmp.ne.s32.totalorder %s36, %s52
      %p54 = scmp.eq.s32.totalorder %s28, 0
      %p55 = por %p53, %p54
      %s57 = sadd.s32 %s56, 1
      %p60 = scmp.eq.s32.totalorder %s22, 1
      %p61 = scmp.ne.s32.totalorder %s56, %s58
      %p62 = scmp.eq.s32.totalorder %s22, 0
      %p63 = por %p61, %p62
      %p64 = scmp.ne.s32.totalorder %s56, %s58
      %p65 = scmp.eq.s32.totalorder %s27, 1
      %p66 = por %p64, %p65
      %p67 = scmp.ne.s32.totalorder %s58, %s59
      %p68 = scmp.eq.s32.totalorder %s27, 0
      %p69 = por %p67, %p68
      %p70 = scmp.ne.s32.totalorder %s58, %s59
      %p71 = scmp.eq.s32.totalorder %s28, 1
      %p72 = por %p70, %p71
      %p74 = scmp.ne.s32.totalorder %s59, %s73
      %p75 = scmp.eq.s32.totalorder %s28, 0
      %p76 = por %p74, %p75
      %s78 = sadd.s32 %s77, 1
      %p81 = scmp.eq.s32.totalorder %s22, 1
      %p82 = scmp.ne.s32.totalorder %s77, %s79
      %p83 = scmp.eq.s32.totalorder %s22, 0
      %p84 = por %p82, %p83
      %p85 = scmp.ne.s32.totalorder %s77, %s79
      %p86 = scmp.eq.s32.totalorder %s27, 1
      %p87 = por %p85, %p86
      %p88 = scmp.ne.s32.totalorder %s79, %s80
      %p89 = scmp.eq.s32.totalorder %s27, 0
      %p90 = por %p88, %p89
      %p91 = scmp.ne.s32.totalorder %s79, %s80
      %p92 = scmp.eq.s32.totalorder %s28, 1
      %p93 = por %p91, %p92
      %p95 = scmp.ne.s32.totalorder %s80, %s94
      %p96 = scmp.eq.s32.totalorder %s28, 0
      %p97 = por %p95, %p96
      %s99 = sadd.s32 %s98, 1
      %p102 = scmp.eq.s32.totalorder %s22, 1
      %p103 = scmp.ne.s32.totalorder %s98, %s100
      %p104 = scmp.eq.s32.totalorder %s22, 0
      %p105 = por %p103, %p104
      %p106 = scmp.ne.s32.totalorder %s98, %s100
      %p107 = scmp.eq.s32.totalorder %s27, 1
      %p108 = por %p106, %p107
      %p109 = scmp.ne.s32.totalorder %s100, %s101
      %p110 = scmp.eq.s32.totalorder %s27, 0
      %p111 = por %p109, %p110
      %p112 = scmp.ne.s32.totalorder %s100, %s101
      %p113 = scmp.eq.s32.totalorder %s28, 1
      %p114 = por %p112, %p113
      %p116 = scmp.ne.s32.totalorder %s101, %s115
      %p117 = scmp.eq.s32.totalorder %s28, 0
      %p118 = por %p116, %p117
      %s120 = sadd.s32 %s119, 1
      %p123 = scmp.eq.s32.totalorder %s22, 1
      %p124 = scmp.ne.s32.totalorder %s119, %s121
      %p125 = scmp.eq.s32.totalorder %s22, 0
      %p126 = por %p124, %p125
      %p127 = scmp.ne.s32.totalorder %s119, %s121
      %p128 = scmp.eq.s32.totalorder %s27, 1
      %p129 = por %p127, %p128
      %p130 = scmp.ne.s32.totalorder %s121, %s122
      %p131 = scmp.eq.s32.totalorder %s27, 0
      %p132 = por %p130, %p131
      %p133 = scmp.ne.s32.totalorder %s121, %s122
      %p134 = scmp.eq.s32.totalorder %s28, 1
      %p135 = por %p133, %p134
      %p137 = scmp.ne.s32.totalorder %s122, %s136
      %p138 = scmp.eq.s32.totalorder %s28, 0
      %p139 = por %p137, %p138
      %s141 = sadd.s32 %s140, 1
      %p144 = scmp.eq.s32.totalorder %s22, 1
      %p145 = scmp.ne.s32.totalorder %s140, %s142
      %p146 = scmp.eq.s32.totalorder %s22, 0
      %p147 = por %p145, %p146
      %p148 = scmp.ne.s32.totalorder %s140, %s142
      %p149 = scmp.eq.s32.totalorder %s27, 1
      %p150 = por %p148, %p149
      %p151 = scmp.ne.s32.totalorder %s142, %s143
      %p152 = scmp.eq.s32.totalorder %s27, 0
      %p153 = por %p151, %p152
      %p154 = scmp.ne.s32.totalorder %s142, %s143
      %p155 = scmp.eq.s32.totalorder %s28, 1
      %p156 = por %p154, %p155
      %p158 = scmp.ne.s32.totalorder %s143, %s157
      %p159 = scmp.eq.s32.totalorder %s28, 0
      %p160 = por %p158, %p159
      %s162 = sadd.s32 %s161, 1
      %p165 = scmp.eq.s32.totalorder %s22, 1
      %p166 = scmp.ne.s32.totalorder %s161, %s163
      %p167 = scmp.eq.s32.totalorder %s22, 0
      %p168 = por %p166, %p167
      %p169 = scmp.ne.s32.totalorder %s161, %s163
      %p170 = scmp.eq.s32.totalorder %s27, 1
      %p171 = por %p169, %p170
      %p172 = scmp.ne.s32.totalorder %s163, %s164
      %p173 = scmp.eq.s32.totalorder %s27, 0
      %p174 = por %p172, %p173
      %p175 = scmp.ne.s32.totalorder %s163, %s164
      %p176 = scmp.eq.s32.totalorder %s28, 1
      %p177 = por %p175, %p176
      %p179 = scmp.ne.s32.totalorder %s164, %s178
      %p180 = scmp.eq.s32.totalorder %s28, 0
      %p181 = por %p179, %p180
      %s183 = sadd.s32 %s182, 1
      %p186 = scmp.eq.s32.totalorder %s22, 1
      %p187 = scmp.ne.s32.totalorder %s182, %s184
      %p188 = scmp.eq.s32.totalorder %s22, 0
      %p189 = por %p187, %p188
      %p190 = scmp.ne.s32.totalorder %s182, %s184
      %p191 = scmp.eq.s32.totalorder %s27, 1
      %p192 = por %p190, %p191
      %p193 = scmp.ne.s32.totalorder %s184, %s185
      %p194 = scmp.eq.s32.totalorder %s27, 0
      %p195 = por %p193, %p194
      %p196 = scmp.ne.s32.totalorder %s184, %s185
      %p197 = scmp.eq.s32.totalorder %s28, 1
      %p198 = por %p196, %p197
      %p200 = scmp.ne.s32.totalorder %s185, %s199
      %p201 = scmp.eq.s32.totalorder %s28, 0
      %p202 = por %p200, %p201
      %s204 = sadd.s32 %s203, 1
      %p207 = scmp.eq.s32.totalorder %s22, 1
      %p208 = scmp.ne.s32.totalorder %s203, %s205
      %p209 = scmp.eq.s32.totalorder %s22, 0
      %p210 = por %p208, %p209
      %p211 = scmp.ne.s32.totalorder %s203, %s205
      %p212 = scmp.eq.s32.totalorder %s27, 1
      %p213 = por %p211, %p212
      %p214 = scmp.ne.s32.totalorder %s205, %s206
      %p215 = scmp.eq.s32.totalorder %s27, 0
      %p216 = por %p214, %p215
      %p217 = scmp.ne.s32.totalorder %s205, %s206
      %p218 = scmp.eq.s32.totalorder %s28, 1
      %p219 = por %p217, %p218
      %p221 = scmp.ne.s32.totalorder %s206, %s220
      %p222 = scmp.eq.s32.totalorder %s28, 0
      %p223 = por %p221, %p222
      %s225 = sadd.s32 %s224, 1
      %p228 = scmp.eq.s32.totalorder %s22, 1
      %p229 = scmp.ne.s32.totalorder %s224, %s226
      %p230 = scmp.eq.s32.totalorder %s22, 0
      %p231 = por %p229, %p230
      %p232 = scmp.ne.s32.totalorder %s224, %s226
      %p233 = scmp.eq.s32.totalorder %s27, 1
      %p234 = por %p232, %p233
      %p235 = scmp.ne.s32.totalorder %s226, %s227
      %p236 = scmp.eq.s32.totalorder %s27, 0
      %p237 = por %p235, %p236
      %p238 = scmp.ne.s32.totalorder %s226, %s227
      %p239 = scmp.eq.s32.totalorder %s28, 1
      %p240 = por %p238, %p239
      %p242 = scmp.ne.s32.totalorder %s227, %s241
      %p243 = scmp.eq.s32.totalorder %s28, 0
      %p244 = por %p242, %p243
      %s246 = sadd.s32 %s245, 1
      %p249 = scmp.eq.s32.totalorder %s22, 1
      %p250 = scmp.ne.s32.totalorder %s245, %s247
      %p251 = scmp.eq.s32.totalorder %s22, 0
      %p252 = por %p250, %p251
      %p253 = scmp.ne.s32.totalorder %s245, %s247
      %p254 = scmp.eq.s32.totalorder %s27, 1
      %p255 = por %p253, %p254
      %p256 = scmp.ne.s32.totalorder %s247, %s248
      %p257 = scmp.eq.s32.totalorder %s27, 0
      %p258 = por %p256, %p257
      %p259 = scmp.ne.s32.totalorder %s247, %s248
      %p260 = scmp.eq.s32.totalorder %s28, 1
      %p261 = por %p259, %p260
      %p263 = scmp.ne.s32.totalorder %s248, %s262
      %p264 = scmp.eq.s32.totalorder %s28, 0
      %p265 = por %p263, %p264
      %s266 = ssub.s32 %s22, %s29
      %p267 = scmp.eq.s32.totalorder %s266, 0
      %s269 = sadd.s32 %s268, 1
      %s270 = scalar_select %p267, %s268, %s269
      %p273 = pneg %p267
      %p274 = scmp.eq.s32.totalorder %s22, 1
      %p275 = por %p273, %p274
      %p276 = scmp.ne.s32.totalorder %s268, %s271
      %p277 = scmp.eq.s32.totalorder %s22, 0
      %p278 = por %p276, %p277
      %p279 = scmp.ne.s32.totalorder %s268, %s271
      %p280 = scmp.eq.s32.totalorder %s27, 1
      %p281 = por %p279, %p280
      %p282 = scmp.ne.s32.totalorder %s271, %s272
      %p283 = scmp.eq.s32.totalorder %s27, 0
      %p284 = por %p282, %p283
      %p285 = scmp.ne.s32.totalorder %s271, %s272
      %p286 = scmp.eq.s32.totalorder %s28, 1
      %p287 = por %p285, %p286
      %p289 = scmp.ne.s32.totalorder %s272, %s288
      %p290 = scmp.eq.s32.totalorder %s28, 0
      %p291 = por %p289, %p290
      %p292 = scmp.le.s32.totalorder 1, %s22
      %p293 = scmp.lt.s32.totalorder %s22, 3
      %p294 = pnand %p292, %p293
      %p295 = pneg %p294
      // Predicated region
      $region9: #{tpu_custom_call.1} parent=5 // pred_check
        _
      $region10: #{tpu_custom_call.1} parent=5 // pred_check_branch
        %297 = sbr.rel (%p294) target = $region12
      $region11: #{tpu_custom_call.1} parent=5 // pred_region
        %s298 = ssub.s32 %s22, 1
        // Predicated region
        $region13: #{tpu_custom_call.1} parent=11 // pred_check
          %p299 = pneg %p69
        $region14: #{tpu_custom_call.1} parent=11 // pred_check_branch
          %301 = sbr.rel (%p299) target = $region16
        $region15: #{tpu_custom_call.1} parent=11 // pred_region
          _
        $region16: #{tpu_custom_call.1} parent=11 // pred_fallthru
          _
        // Predicated region
        $region17: #{tpu_custom_call.1} parent=11 // pred_check
          %p302 = pneg %p90
        $region18: #{tpu_custom_call.1} parent=11 // pred_check_branch
          %304 = sbr.rel (%p302) target = $region20
        $region19: #{tpu_custom_call.1} parent=11 // pred_region
          _
        $region20: #{tpu_custom_call.1} parent=11 // pred_fallthru
          _
        // Predicated region
        $region21: #{tpu_custom_call.1} parent=11 // pred_check
          %p305 = pneg %p111
        $region22: #{tpu_custom_call.1} parent=11 // pred_check_branch
          %307 = sbr.rel (%p305) target = $region24
        $region23: #{tpu_custom_call.1} parent=11 // pred_region
          _
        $region24: #{tpu_custom_call.1} parent=11 // pred_fallthru
          _
        // Predicated region
        $region25: #{tpu_custom_call.1} parent=11 // pred_check
          %p308 = pneg %p132
        $region26: #{tpu_custom_call.1} parent=11 // pred_check_branch
          %310 = sbr.rel (%p308) target = $region28
        $region27: #{tpu_custom_call.1} parent=11 // pred_region
          _
        $region28: #{tpu_custom_call.1} parent=11 // pred_fallthru
          _
        // Predicated region
        $region29: #{tpu_custom_call.1} parent=11 // pred_check
          %p311 = pneg %p153
        $region30: #{tpu_custom_call.1} parent=11 // pred_check_branch
          %313 = sbr.rel (%p311) target = $region32
        $region31: #{tpu_custom_call.1} parent=11 // pred_region
          _
        $region32: #{tpu_custom_call.1} parent=11 // pred_fallthru
          _
        // Predicated region
        $region33: #{tpu_custom_call.1} parent=11 // pred_check
          %p314 = pneg %p174
        $region34: #{tpu_custom_call.1} parent=11 // pred_check_branch
          %316 = sbr.rel (%p314) target = $region36
        $region35: #{tpu_custom_call.1} parent=11 // pred_region
          _
        $region36: #{tpu_custom_call.1} parent=11 // pred_fallthru
          _
        // Predicated region
        $region37: #{tpu_custom_call.1} parent=11 // pred_check
          %p317 = pneg %p195
        $region38: #{tpu_custom_call.1} parent=11 // pred_check_branch
          %319 = sbr.rel (%p317) target = $region40
        $region39: #{tpu_custom_call.1} parent=11 // pred_region
          _
        $region40: #{tpu_custom_call.1} parent=11 // pred_fallthru
          _
        // Predicated region
        $region41: #{tpu_custom_call.1} parent=11 // pred_check
          %p320 = pneg %p216
        $region42: #{tpu_custom_call.1} parent=11 // pred_check_branch
          %322 = sbr.rel (%p320) target = $region44
        $region43: #{tpu_custom_call.1} parent=11 // pred_region
          _
        $region44: #{tpu_custom_call.1} parent=11 // pred_fallthru
          _
        // Predicated region
        $region45: #{tpu_custom_call.1} parent=11 // pred_check
          %p323 = pneg %p237
        $region46: #{tpu_custom_call.1} parent=11 // pred_check_branch
          %325 = sbr.rel (%p323) target = $region48
        $region47: #{tpu_custom_call.1} parent=11 // pred_region
          _
        $region48: #{tpu_custom_call.1} parent=11 // pred_fallthru
          _
        // Predicated region
        $region49: #{tpu_custom_call.1} parent=11 // pred_check
          %p326 = pneg %p258
        $region50: #{tpu_custom_call.1} parent=11 // pred_check_branch
          %328 = sbr.rel (%p326) target = $region52
        $region51: #{tpu_custom_call.1} parent=11 // pred_region
          _
        $region52: #{tpu_custom_call.1} parent=11 // pred_fallthru
          _
      $region12: #{tpu_custom_call.1} parent=5 // pred_fallthru
        _
      %p329 = scmp.lt.s32.totalorder %s22, 2
      // Predicated region
      $region53: #{tpu_custom_call.1} parent=5 // pred_check
        %p330 = pneg %p329
      $region54: #{tpu_custom_call.1} parent=5 // pred_check_branch
        %332 = sbr.rel (%p330) target = $region56
      $region55: #{tpu_custom_call.1} parent=5 // pred_region
        // Predicated region
        $region57: #{tpu_custom_call.1} parent=55 // pred_check
          %p333 = pneg %p42
        $region58: #{tpu_custom_call.1} parent=55 // pred_check_branch
          %335 = sbr.rel (%p333) target = $region60
        $region59: #{tpu_custom_call.1} parent=55 // pred_region
          %p336 = scmp.lt.s32.totalorder %s22, 1
          %s337 = scalar_select %p336, %s22, 1
          %s338 = smul.addr %s337, 8
          %s339 = scalar_lea.vmem %s0, %s338
        $region60: #{tpu_custom_call.1} parent=55 // pred_fallthru
          _
      $region56: #{tpu_custom_call.1} parent=5 // pred_fallthru
        _
      %p340 = scmp.le.s32.totalorder 1, %s22
      %p341 = scmp.lt.s32.totalorder %s22, 3
      %p342 = pnand %p340, %p341
      %p343 = pneg %p342
      // Predicated region
      $region61: #{tpu_custom_call.1} parent=5 // pred_check
        _
      $region62: #{tpu_custom_call.1} parent=5 // pred_check_branch
        %345 = sbr.rel (%p342) target = $region64
      $region63: #{tpu_custom_call.1} parent=5 // pred_region
        %s346 = ssub.s32 %s22, 1
        %p347 = scmp.lt.s32.totalorder %s27, 1
        %s348 = scalar_select %p347, %s27, 1
        %s349 = smul.addr %s348, 8
        %s350 = scalar_lea.vmem %s0, %s349
        %p351 = pneg %p48
        %p352 = pneg %p45
        %p353 = pneg %p69
        %p354 = pneg %p66
        %p355 = pneg %p90
        %p356 = pneg %p87
        %p357 = pneg %p111
        %p358 = pneg %p108
        %p359 = pneg %p132
        %p360 = pneg %p129
        %p361 = pneg %p153
        %p362 = pneg %p150
        %p363 = pneg %p174
        %p364 = pneg %p171
        %p365 = pneg %p195
        %p366 = pneg %p192
        %p367 = pneg %p216
        %p368 = pneg %p213
        %p369 = pneg %p237
        %p370 = pneg %p234
        %p371 = pneg %p258
        %p372 = pneg %p255
        %p373 = pneg %p284
        %p374 = pneg %p281
        %s375 = sand.u32 %s271, 1
        %s376 = scalar_lea.sflag [#allocation4], %s375
        %s377 = sand.u32 %s271, 1
        %s378 = scalar_lea.vmem [#allocation3], %s377
        %p379 = scmp.lt.s32.totalorder %s27, 1
        %s380 = scalar_select %p379, %s27, 1
        %s381 = smul.addr %s380, 8
        %s382 = scalar_lea.vmem %s0, %s381
        %v383 = vld [vmem:[%s382] sm:$0xff]
        %v384 = vlaneseq
        %v385 = vshrl.u32 %v384, 7
        %vm386 = vcmp.ge.s32.totalorder %v385, 1
        %v387 = vrot.slane %v383, 7
        %v388 = vsel %vm386, %v387, 0.0
        %vm389 = vcmp.le.s32.totalorder %v385, 6
        %v390 = vrot.slane %v383, 1
        %v391 = vsel %vm389, %v390, 0.0
        %393 = vrot.lane.b32.xlu0 %v383, 32
        %v394 = vpop.permute.xlu0 %393
        %397 = vrot.lane.b32.xlu0 %v391, 64
        %v398 = vpop.permute.xlu0 %397
        %vm400 = vcmask 261120
        %v401 = vsel %vm400, %v388, %v394
        %vm402 = vcmask 523264
        %v403 = vsel %vm402, %v401, %v398
        %v404 = vld [vmem:[%s1] sm:$0xff]
        %v405 = vld [vmem:[%s1 + $0x8] sm:$0xff]
        %v406 = vld [vmem:[%s1 + $0x10] sm:$0xff]
        %v407 = vld [vmem:[%s1 + $0x18] sm:$0xff]
        %v408 = vld [vmem:[%s1 + $0x20] sm:$0xff]
        %v409 = vld [vmem:[%s1 + $0x28] sm:$0xff]
        %v410 = vld [vmem:[%s1 + $0x30] sm:$0xff]
        %v411 = vld [vmem:[%s1 + $0x38] sm:$0xff]
        %v412 = vld [vmem:[%s1 + $0x40] sm:$0xff]
        %v413 = vld [vmem:[%s1 + $0x48] sm:$0xff]
        %v414 = vld [vmem:[%s1 + $0x50] sm:$0xff]
        %v415 = vld [vmem:[%s1 + $0x58] sm:$0xff]
        %v416 = vld [vmem:[%s2] sm:$0x1]
        %v418 = vlaneseq
        %v419 = vshrl.u32 %v418, 7
        %v420 = vsub.s32 0, %v419
        %v421 = vrot.slane %v416, %v420
        %vm423 = vcmask 785408
        %v425 = vsel %vm423, %v403, 0
        %427 = vmatprep.subr.mxu0 0.0
        %428 = vmatpush1.msra.mxu0 %v404
        %429 = vmatprep.subr.mxu0 0.0
        %430 = vmatpush1.msra.mxu0 %v405
        %431 = vmatprep.subr.mxu0 0.0
        %432 = vmatpush1.msra.mxu0 %v406
        %433 = vmatprep.subr.mxu0 0.0
        %434 = vmatpush1.msra.mxu0 %v407
        %435 = vmatprep.subr.mxu0 0.0
        %436 = vmatpush1.msra.mxu0 %v408
        %437 = vmatprep.subr.mxu0 0.0
        %438 = vmatpush1.msra.mxu0 %v409
        %439 = vmatprep.subr.mxu0 0.0
        %440 = vmatpush1.msra.mxu0 %v410
        %441 = vmatprep.subr.mxu0 0.0
        %442 = vmatpush1.msra.mxu0 %v411
        %443 = vmatprep.subr.mxu0 0.0
        %444 = vmatpush1.msra.mxu0 %v412
        %445 = vmatprep.subr.mxu0 0.0
        %446 = vmatpush1.msra.mxu0 %v413
        %447 = vmatprep.subr.mxu0 0.0
        %448 = vmatpush1.msra.mxu0 %v414
        %449 = vmatprep.subr.mxu0 0.0
        %450 = vmatpush1.msra.mxu0 %v415
        %451 = vmatprep.subr.mxu0 0.0
        %452 = vmatpush1.msra.mxu0 0.0
        %453 = vmatprep.subr.mxu0 0.0
        %454 = vmatpush1.msra.mxu0 0.0
        %455 = vmatprep.subr.mxu0 0.0
        %456 = vmatpush1.msra.mxu0 0.0
        %457 = vmatprep.subr.mxu0 0.0
        %458 = vmatpush1.msra.mxu0 0.0
        %459 = vmatprep.subr.mxu0 0.0
        %460 = vmatpush1.msra.mxu0 0.0
        %461 = vmatprep.subr.mxu0 0.0
        %462 = vmatpush1.msra.mxu0 0.0
        %463 = vmatprep.subr.mxu0 0.0
        %464 = vmatpush1.msra.mxu0 0.0
        %465 = vmatprep.subr.mxu0 0.0
        %466 = vmatpush1.msra.mxu0 0.0
        %467 = vmatprep.subr.mxu0 0.0
        %468 = vmatpush1.msra.mxu0 0.0
        %469 = vmatprep.subr.mxu0 0.0
        %470 = vmatpush1.msra.mxu0 0.0
        %471 = vmatprep.subr.mxu0 0.0
        %472 = vmatpush1.msra.mxu0 0.0
        %473 = vmatprep.subr.mxu0 0.0
        %474 = vmatpush1.msra.mxu0 0.0
        %475 = vmatprep.subr.mxu0 0.0
        %476 = vmatpush1.msra.mxu0 0.0
        %477 = vmatprep.subr.mxu0 0.0
        %478 = vmatpush1.msra.mxu0 0.0
        %479 = vmatprep.subr.mxu0 0.0
        %480 = vmatpush1.msra.mxu0 0.0
        %481 = vmatprep.subr.mxu0 0.0
        %482 = vmatpush1.msra.mxu0 0.0
        %483 = vmatprep.subr.mxu0 0.0
        %484 = vmatpush1.msra.mxu0 0.0
        %485 = vmatprep.subr.mxu0 0.0
        %486 = vmatpush1.msra.mxu0 0.0
        %487 = vmatprep.subr.mxu0 0.0
        %488 = vmatpush1.msra.mxu0 0.0
        %489 = vmatprep.subr.mxu0 0.0
        %490 = vmatpush1.msra.mxu0 0.0
        %491 = vmatprep.mubr.f32.mxu0 0.0
        %492 = vmatmul.mubr.f32.gmra.mrb[0].mxu0 %v425
        %v493 = vpop.f32.mrb[0].mxu0
        %v494 = vadd.f32 %v421, %v493
        %v495 = vpop.f32.mrb[0].mxu0
        %496 = vdwg.mxu0
        %v497 = vld [vmem:[%s3] sm:$0x1]
        %v498 = vld [vmem:[%s4] sm:$0x1]
        %v499 = vsel %vm400, %v494, 0.0
        %500 = vadd.xlane.f32.xlu0 %v499
        %v501 = vpop.xlane.xlu0 %500
        %v502 = vrcp.pop 32.0
        %v503 = vmul.f32 %v501, %v502
        %v504 = vsub.f32 %v494, %v503
        %v505 = vmul.f32 %v504, %v504
        %v506 = vsel %vm400, %v505, 0.0
        %507 = vadd.xlane.f32.xlu0 %v506
        %v508 = vpop.xlane.xlu0 %507
        %v509 = vmul.f32 %v508, %v502
        %v510 = vadd.f32 %v509, 1e-05
        %v511 = vrsqrt.pop %v510
        %v512 = vmul.f32 %v504, %v511
        %v514 = vlaneseq
        %v515 = vshrl.u32 %v514, 7
        %v516 = vsub.s32 0, %v515
        %v517 = vrot.slane %v497, %v516
        %v519 = vmul.f32 %v512, %v517
        %v521 = vlaneseq
        %v522 = vshrl.u32 %v521, 7
        %v523 = vsub.s32 0, %v522
        %v524 = vrot.slane %v498, %v523
        %v526 = vadd.f32 %v519, %v524
        %v527 = vmax.f32 %v526, 0.0
        %v528 = vrot.slane %v527, 7
        %v529 = vsel %vm386, %v528, 0.0
        %v530 = vrot.slane %v527, 1
        %v531 = vsel %vm389, %v530, 0.0
        %533 = vrot.lane.b32.xlu0 %v527, 32
        %v534 = vpop.permute.xlu0 %533
        %537 = vrot.lane.b32.xlu0 %v531, 64
        %v538 = vpop.permute.xlu0 %537
        %v540 = vsel %vm400, %v529, %v534
        %v541 = vsel %vm402, %v540, %v538
        %v542 = vld [vmem:[%s5] sm:$0xff]
        %v543 = vld [vmem:[%s5 + $0x8] sm:$0xff]
        %v544 = vld [vmem:[%s5 + $0x10] sm:$0xff]
        %v545 = vld [vmem:[%s5 + $0x18] sm:$0xff]
        %v546 = vld [vmem:[%s5 + $0x20] sm:$0xff]
        %v547 = vld [vmem:[%s5 + $0x28] sm:$0xff]
        %v548 = vld [vmem:[%s5 + $0x30] sm:$0xff]
        %v549 = vld [vmem:[%s5 + $0x38] sm:$0xff]
        %v550 = vld [vmem:[%s5 + $0x40] sm:$0xff]
        %v551 = vld [vmem:[%s5 + $0x48] sm:$0xff]
        %v552 = vld [vmem:[%s5 + $0x50] sm:$0xff]
        %v553 = vld [vmem:[%s5 + $0x58] sm:$0xff]
        %v554 = vld [vmem:[%s6] sm:$0x1]
        %v556 = vlaneseq
        %v557 = vshrl.u32 %v556, 7
        %v558 = vsub.s32 0, %v557
        %v559 = vrot.slane %v554, %v558
        %v562 = vsel %vm423, %v541, 0
        %564 = vmatprep.subr.mxu0 0.0
        %565 = vmatpush1.msra.mxu0 %v542
        %566 = vmatprep.subr.mxu0 0.0
        %567 = vmatpush1.msra.mxu0 %v543
        %568 = vmatprep.subr.mxu0 0.0
        %569 = vmatpush1.msra.mxu0 %v544
        %570 = vmatprep.subr.mxu0 0.0
        %571 = vmatpush1.msra.mxu0 %v545
        %572 = vmatprep.subr.mxu0 0.0
        %573 = vmatpush1.msra.mxu0 %v546
        %574 = vmatprep.subr.mxu0 0.0
        %575 = vmatpush1.msra.mxu0 %v547
        %576 = vmatprep.subr.mxu0 0.0
        %577 = vmatpush1.msra.mxu0 %v548
        %578 = vmatprep.subr.mxu0 0.0
        %579 = vmatpush1.msra.mxu0 %v549
        %580 = vmatprep.subr.mxu0 0.0
        %581 = vmatpush1.msra.mxu0 %v550
        %582 = vmatprep.subr.mxu0 0.0
        %583 = vmatpush1.msra.mxu0 %v551
        %584 = vmatprep.subr.mxu0 0.0
        %585 = vmatpush1.msra.mxu0 %v552
        %586 = vmatprep.subr.mxu0 0.0
        %587 = vmatpush1.msra.mxu0 %v553
        %588 = vmatprep.subr.mxu0 0.0
        %589 = vmatpush1.msra.mxu0 0.0
        %590 = vmatprep.subr.mxu0 0.0
        %591 = vmatpush1.msra.mxu0 0.0
        %592 = vmatprep.subr.mxu0 0.0
        %593 = vmatpush1.msra.mxu0 0.0
        %594 = vmatprep.subr.mxu0 0.0
        %595 = vmatpush1.msra.mxu0 0.0
        %596 = vmatprep.subr.mxu0 0.0
        %597 = vmatpush1.msra.mxu0 0.0
        %598 = vmatprep.subr.mxu0 0.0
        %599 = vmatpush1.msra.mxu0 0.0
        %600 = vmatprep.subr.mxu0 0.0
        %601 = vmatpush1.msra.mxu0 0.0
        %602 = vmatprep.subr.mxu0 0.0
        %603 = vmatpush1.msra.mxu0 0.0
        %604 = vmatprep.subr.mxu0 0.0
        %605 = vmatpush1.msra.mxu0 0.0
        %606 = vmatprep.subr.mxu0 0.0
        %607 = vmatpush1.msra.mxu0 0.0
        %608 = vmatprep.subr.mxu0 0.0
        %609 = vmatpush1.msra.mxu0 0.0
        %610 = vmatprep.subr.mxu0 0.0
        %611 = vmatpush1.msra.mxu0 0.0
        %612 = vmatprep.subr.mxu0 0.0
        %613 = vmatpush1.msra.mxu0 0.0
        %614 = vmatprep.subr.mxu0 0.0
        %615 = vmatpush1.msra.mxu0 0.0
        %616 = vmatprep.subr.mxu0 0.0
        %617 = vmatpush1.msra.mxu0 0.0
        %618 = vmatprep.subr.mxu0 0.0
        %619 = vmatpush1.msra.mxu0 0.0
        %620 = vmatprep.subr.mxu0 0.0
        %621 = vmatpush1.msra.mxu0 0.0
        %622 = vmatprep.subr.mxu0 0.0
        %623 = vmatpush1.msra.mxu0 0.0
        %624 = vmatprep.subr.mxu0 0.0
        %625 = vmatpush1.msra.mxu0 0.0
        %626 = vmatprep.subr.mxu0 0.0
        %627 = vmatpush1.msra.mxu0 0.0
        %628 = vmatprep.mubr.f32.mxu0 0.0
        %629 = vmatmul.mubr.f32.gmra.mrb[0].mxu0 %v562
        %v630 = vpop.f32.mrb[0].mxu0
        %v631 = vadd.f32 %v559, %v630
        %v632 = vpop.f32.mrb[0].mxu0
        %633 = vdwg.mxu0
        %v634 = vld [vmem:[%s7] sm:$0x1]
        %v635 = vld [vmem:[%s8] sm:$0x1]
        %v636 = vsel %vm400, %v631, 0.0
        %637 = vadd.xlane.f32.xlu0 %v636
        %v638 = vpop.xlane.xlu0 %637
        %v639 = vmul.f32 %v638, %v502
        %v640 = vsub.f32 %v631, %v639
        %v641 = vmul.f32 %v640, %v640
        %v642 = vsel %vm400, %v641, 0.0
        %643 = vadd.xlane.f32.xlu0 %v642
        %v644 = vpop.xlane.xlu0 %643
        %v645 = vmul.f32 %v644, %v502
        %v646 = vadd.f32 %v645, 1e-05
        %v647 = vrsqrt.pop %v646
        %v648 = vmul.f32 %v640, %v647
        %v650 = vlaneseq
        %v651 = vshrl.u32 %v650, 7
        %v652 = vsub.s32 0, %v651
        %v653 = vrot.slane %v634, %v652
        %v655 = vmul.f32 %v648, %v653
        %v657 = vlaneseq
        %v658 = vshrl.u32 %v657, 7
        %v659 = vsub.s32 0, %v658
        %v660 = vrot.slane %v635, %v659
        %v662 = vadd.f32 %v655, %v660
        %v663 = vmax.f32 %v662, 0.0
        %v664 = vld [vmem:[%s9] sm:$0x1]
        %v666 = vlaneseq
        %v667 = vshrl.u32 %v666, 7
        %v668 = vsub.s32 0, %v667
        %v669 = vrot.slane %v664, %v668
        %v671 = vmul.f32 %v663, %v669
        %v672 = vsel %vm400, %v671, 0.0
        %673 = vadd.xlane.f32.xlu0 %v672
        %v674 = vpop.xlane.xlu0 %673
        %v675 = vld [vmem:[#allocation2] sm:$0x1]
        %s676 = vtos %v675
        %v677 = vstv %s676
        %v678 = vadd.f32 %v674, %v677
        %v679 = vmax.f32 %v678, 0.0
        %v681 = vlaneseq
        %v682 = vand.u32 %v681, 127
        %v683 = vlaneseq
        %v684 = vshrl.u32 %v683, 7
        %v685 = vsub.s32 %v682, %v684
        %v686 = vrot.slane %v679, %v685
        %vm688 = vcmask 57344
        %689 = vst.msk [vmem:[%s378] sm:$0x1] %vm688, %v686
        %s690 = sand.u32 %s271, 1
        %s691 = scalar_lea.sflag [#allocation4], %s690
        %s692 = sand.u32 %s271, 1
        %s693 = scalar_lea.vmem [#allocation3], %s692
        // Predicated region
        $region65: #{tpu_custom_call.1} parent=63 // pred_check
          %p694 = pneg %p281
        $region66: #{tpu_custom_call.1} parent=63 // pred_check_branch
          %696 = sbr.rel (%p694) target = $region68
        $region67: #{tpu_custom_call.1} parent=63 // pred_region
          %s698 = ssub.s32 16, 16
          %699 = vsyncadd %s691, %s698
          %s700 = smul.addr %s27, 16
          %s701 = scalar_lea.hbm %s11, %s700
          %s703 = sshll.u32 %s693, 4
          %s704 = int_to_ptr.vmem [resolvable:$true] %s703
          %706 = dma.vmem_to_hbm [thread:$0]  %s704, 16, %s701, %s691
        $region68: #{tpu_custom_call.1} parent=63 // pred_fallthru
          _
      $region64: #{tpu_custom_call.1} parent=5 // pred_fallthru
        _
      %p707 = scmp.le.s32.totalorder 2, %s22
      // Predicated region
      $region69: #{tpu_custom_call.1} parent=5 // pred_check
        %p708 = pneg %p707
      $region70: #{tpu_custom_call.1} parent=5 // pred_check_branch
        %710 = sbr.rel (%p708) target = $region72
      $region71: #{tpu_custom_call.1} parent=5 // pred_region
        %s711 = ssub.s32 %s22, 2
        // Predicated region
        $region73: #{tpu_custom_call.1} parent=71 // pred_check
          %p712 = pneg %p287
        $region74: #{tpu_custom_call.1} parent=71 // pred_check_branch
          %714 = sbr.rel (%p712) target = $region76
        $region75: #{tpu_custom_call.1} parent=71 // pred_region
          %s715 = sand.u32 %s272, 1
          %s716 = scalar_lea.sflag [#allocation4], %s715
          %s717 = sand.u32 %s272, 1
          %s718 = scalar_lea.vmem [#allocation3], %s717
          %719 = dma.done %s716, 16
        $region76: #{tpu_custom_call.1} parent=71 // pred_fallthru
          _
      $region72: #{tpu_custom_call.1} parent=5 // pred_fallthru
        _
    $region6: #{tpu_custom_call.1} parent=1 // loop_footer
      %s26 = sadd.s32 1, %s22
    $region7: #{tpu_custom_call.1} parent=1 // loop_footer_branch
      %21 = sbr.rel target = $region3
    $region8: #{tpu_custom_call.1} parent=1 // loop_exit
      _
    %720 = vsyncpa [#allocation4], 1
    %s721 = scalar_lea.sflag [#allocation4], 1
    %722 = vsyncpa %s721, 1

</llo_original>
